<compile_context>
chip_gen: v7x
topology: tpu7x:2x2x1
jax: 0.10.0
libtpu: 0.0.40
codegen_flags: <defaults>
</compile_context>

<pallas_src>
import jax
import jax.numpy as jnp
from jax.experimental import pallas as pl
from jax.experimental.pallas import tpu as pltpu  # noqa: F401  (CompilerParams when scaled up)

B = 2            # batch
C = 4            # in_channels
H = W = 16       # spatial
NB = 4           # num_bins
HW = H * W
NUM_FTRS = C * NB
NUM_CLASSES = 8
EPS = 1e-5       # torch.tensor(10e-6) used in constrain_bins

# Advisory cost estimate for XLA's scheduler (overhead-bound kernel).
_HIST_FLOPS = 10 * NB * B * C * HW + 3 * NB * B * C * B * NUM_CLASSES + B * NUM_CLASSES
_HIST_TRANS = (NB + 1) * B * C * HW            # exp + reciprocal
_HIST_BYTES = 4 * (B * C * HW                  # x
                   + 2 * NB * B * C            # centers + widths
                   + NB * B * C * B * NUM_CLASSES   # block-diagonal FC weight
                   + B * NUM_CLASSES           # bias
                   + NB * B * C                # feats out
                   + B * NUM_CLASSES)          # logits out


def fused_hist_fc_kernel(x_ref, ctr_ref, wid_ref, wblk_ref, bias_ref,
                         feats_ref, logits_ref):
    """Single-invocation fused histogram + Linear.

    x_ref     : (B*C, HW)           input, batch folded onto sublanes
    ctr_ref   : (NB, B*C)           bin centers (bin-major rows)      [lane-dense]
    wid_ref   : (NB, B*C)           bin widths  (bin-major rows)      [lane-dense]
    wblk_ref  : (NB, B*C, B*K)      FC weight, block-diagonal over batch
    bias_ref  : (1, B*K)            FC bias tiled per batch
    feats_ref : (NB, B*C)           pooled histogram features         [lane-dense]
    logits_ref: (1, B*K)            flattened logits
    """
    x = x_ref[...]                                    # (B*C, HW)
    ctr = ctr_ref[...][:, :, None]                    # (NB, B*C, 1)
    wid = wid_ref[...][:, :, None]                    # (NB, B*C, 1)

    # Grouped 1x1 convs + RBF for all bins at once: one fused mul/add, one exp.
    z = wid * (x[None, :, :] + ctr)                   # (NB, B*C, HW)
    vals = jnp.exp(-(z * z))

    # normalize_bins: divide by the sum over bins at each spatial location.
    # pl.reciprocal(approx=True) has small relative error vs an exact divide;
    # switch to `vals / (s + EPS)` if parity tests against torch are tight.
    s = jnp.sum(vals, axis=0)                         # (B*C, HW)  leading-axis adds
    inv = pl.reciprocal(s + EPS, approx=True)         # EUP slot
    normed = vals * inv[None, :, :]                   # (NB, B*C, HW)

    # normalize_count: global average pool over the spatial (lane) axis.
    pooled = jnp.mean(normed, axis=-1, keepdims=True)  # (NB, B*C, 1) for FC broadcast
    # Lane-dense feats store: reduce away the size-1 lane dim (squeeze expressed
    # as a reduction) -> one padded output tile / one store.
    feats_ref[...] = jnp.sum(pooled, axis=-1)          # (NB, B*C)

    # Fused nn.Linear:
    #   logits[j*K + k] = sum_{n,c} pooled[n, j*C + c] * W[c*NB + n, k] + b[k]
    # realized as broadcast-mul against the block-diagonal weight + one fused
    # (leading + cross-sublane) reduction.  Stays on the VPU (no MXU).
    prod = pooled * wblk_ref[...]                      # (NB, B*C, B*K)
    logits_ref[...] = (jnp.sum(prod, axis=(0, 1), keepdims=True)
                       .reshape(1, B * NUM_CLASSES) + bias_ref[...])


def prepare_params(centers, widths, fc_w, fc_b):
    """Weight-only preprocessing. Depends only on the module parameters, not on
    x: compute ONCE and cache; keep it out of the per-forward hot path."""
    centers = centers.astype(jnp.float32)
    widths = widths.astype(jnp.float32)
    fc_w = fc_w.astype(jnp.float32)
    fc_b = fc_b.astype(jnp.float32)

    # Bin-major per-row parameters: param_s[n, j*C + c] = param[c, n].
    ctr_s = jnp.tile(centers.T, (1, B))                # (NB, B*C)
    wid_s = jnp.tile(widths.T, (1, B))                 # (NB, B*C)

    # FC weight permuted to (bin, channel, class) and placed block-diagonally
    # over batch:  wblk[n, j*C + c, j2*K + k] = [j==j2] * fc_w[c*NB + n, k].
    w_nck = fc_w.reshape(C, NB, NUM_CLASSES).transpose(1, 0, 2)   # (NB, C, K)
    eye_b = jnp.eye(B, dtype=jnp.float32)
    wblk = (eye_b[None, :, None, :, None] * w_nck[:, None, :, None, :]) \
        .reshape(NB, B * C, B * NUM_CLASSES)
    bias_flat = jnp.tile(fc_b, (B,)).reshape(1, B * NUM_CLASSES)
    return ctr_s, wid_s, wblk, bias_flat


@jax.jit
def histogram_network_fwd(x_nchw, ctr_s, wid_s, wblk, bias_flat):
    """Hot path: expects cached outputs of prepare_params()."""
    # Fold batch into sublanes, flatten spatial onto lanes: (B*C, HW) = (8, 256).
    xr = x_nchw.reshape(B * C, HW).astype(jnp.float32)

    feats_pooled, logits_flat = pl.pallas_call(
        fused_hist_fc_kernel,
        out_shape=(
            jax.ShapeDtypeStruct((NB, B * C), jnp.float32),
            jax.ShapeDtypeStruct((1, B * NUM_CLASSES), jnp.float32),
        ),
        in_specs=[
            pl.BlockSpec((B * C, HW), lambda: (0, 0)),
            pl.BlockSpec((NB, B * C), lambda: (0, 0)),
            pl.BlockSpec((NB, B * C), lambda: (0, 0)),
            pl.BlockSpec((NB, B * C, B * NUM_CLASSES), lambda: (0, 0, 0)),
            pl.BlockSpec((1, B * NUM_CLASSES), lambda: (0, 0)),
        ],
        out_specs=(
            pl.BlockSpec((NB, B * C), lambda: (0, 0)),
            pl.BlockSpec((1, B * NUM_CLASSES), lambda: (0, 0)),
        ),
        cost_estimate=pl.CostEstimate(
            flops=_HIST_FLOPS,
            transcendentals=_HIST_TRANS,
            bytes_accessed=_HIST_BYTES,
        ),
    )(xr, ctr_s, wid_s, wblk, bias_flat)

    # Kernel layout pooled[n, j*C + c]  ->  torch layout feats[j, c*NB + n, 1, 1]
    # (32-float reorder in the wrapper, free).
    feats = (feats_pooled.reshape(NB, B, C)
             .transpose(1, 2, 0)
             .reshape(B, NUM_FTRS, 1, 1))
    logits = logits_flat.reshape(B, NUM_CLASSES)
    return feats, logits


def histogram_network(x_nchw, centers, widths, fc_w, fc_b):
    """Convenience one-shot wrapper (no parameter caching)."""
    return histogram_network_fwd(x_nchw, *prepare_params(centers, widths, fc_w, fc_b))


if __name__ == "__main__":
    key = jax.random.PRNGKey(0)
    kx, kc, kw, kfw, kfb = jax.random.split(key, 5)

    # Deterministic synthetic parameters (shapes follow the module's __init__)
    x = jax.random.normal(kx, (B, C, H, W), dtype=jnp.float32)
    centers = 0.5 * jax.random.normal(kc, (C, NB), dtype=jnp.float32)        # bin_centers_conv.bias
    widths = 1.0 + 0.5 * jax.random.normal(kw, (C, NB), dtype=jnp.float32)   # bin_widths_conv.weight
    fc_w = 0.1 * jax.random.normal(kfw, (NUM_FTRS, NUM_CLASSES), dtype=jnp.float32)  # nn.Linear weight^T
    fc_b = 0.1 * jax.random.normal(kfb, (NUM_CLASSES,), dtype=jnp.float32)            # nn.Linear bias

    # Weight-only prep computed once and cached (out of the per-forward path).
    params = prepare_params(centers, widths, fc_w, fc_b)
    params = jax.block_until_ready(params)

    feats, logits = histogram_network_fwd(x, *params)
    jax.block_until_ready((feats, logits))
    assert feats.shape == (B, NUM_FTRS, 1, 1)
    assert logits.shape == (B, NUM_CLASSES)
    print("KERNEL_OK")
</pallas_src>

<mosaic_0001>
module attributes {stable_mosaic.version = 11 : i64} {
  func.func @fused_hist_fc_kernel(%arg0: memref<8x256xf32, #tpu.memory_space<vmem>>, %arg1: memref<4x8xf32, #tpu.memory_space<vmem>>, %arg2: memref<4x8xf32, #tpu.memory_space<vmem>>, %arg3: memref<4x8x16xf32, #tpu.memory_space<vmem>>, %arg4: memref<1x16xf32, #tpu.memory_space<vmem>>, %arg5: memref<4x8xf32, #tpu.memory_space<vmem>>, %arg6: memref<1x16xf32, #tpu.memory_space<vmem>>) attributes {dimension_semantics = [], scalar_prefetch = 0 : i64, scratch_operands = 0 : i64, tpu.core_type = #tpu.core_type<tc>} {
    %c0 = arith.constant 0 : index
    %c0_0 = arith.constant 0 : index
    %0 = vector.load %arg0[%c0, %c0_0] : memref<8x256xf32, #tpu.memory_space<vmem>>, vector<8x256xf32>
    %c0_1 = arith.constant 0 : index
    %c0_2 = arith.constant 0 : index
    %1 = vector.load %arg1[%c0_1, %c0_2] : memref<4x8xf32, #tpu.memory_space<vmem>>, vector<4x8xf32>
    %2 = vector.shape_cast %1 : vector<4x8xf32> to vector<4x8x1xf32>
    %c0_3 = arith.constant 0 : index
    %c0_4 = arith.constant 0 : index
    %3 = vector.load %arg2[%c0_3, %c0_4] : memref<4x8xf32, #tpu.memory_space<vmem>>, vector<4x8xf32>
    %4 = vector.shape_cast %3 : vector<4x8xf32> to vector<4x8x1xf32>
    %5 = vector.shape_cast %0 : vector<8x256xf32> to vector<1x8x256xf32>
    %6 = vector.broadcast %5 : vector<1x8x256xf32> to vector<4x8x256xf32>
    %7 = vector.broadcast %2 : vector<4x8x1xf32> to vector<4x8x256xf32>
    %8 = arith.addf %6, %7 : vector<4x8x256xf32>
    %9 = vector.broadcast %4 : vector<4x8x1xf32> to vector<4x8x256xf32>
    %10 = arith.mulf %9, %8 : vector<4x8x256xf32>
    %11 = arith.mulf %10, %10 : vector<4x8x256xf32>
    %cst = arith.constant 0.000000e+00 : f32
    %12 = vector.broadcast %cst : f32 to vector<4x8x256xf32>
    %13 = arith.subf %12, %11 : vector<4x8x256xf32>
    %14 = math.exp %13 : vector<4x8x256xf32>
    %cst_5 = arith.constant dense<0.000000e+00> : vector<8x256xf32>
    %15 = vector.multi_reduction <add>, %14, %cst_5 [0] : vector<4x8x256xf32> to vector<8x256xf32>
    %cst_6 = arith.constant 9.99999974E-6 : f32
    %16 = vector.broadcast %cst_6 : f32 to vector<8x256xf32>
    %17 = arith.addf %15, %16 : vector<8x256xf32>
    %18 = tpu.reciprocal %17 {approx = true} : vector<8x256xf32> -> vector<8x256xf32>
    %19 = vector.shape_cast %18 : vector<8x256xf32> to vector<1x8x256xf32>
    %20 = vector.broadcast %19 : vector<1x8x256xf32> to vector<4x8x256xf32>
    %21 = arith.mulf %14, %20 : vector<4x8x256xf32>
    %cst_7 = arith.constant dense<0.000000e+00> : vector<4x8xf32>
    %22 = vector.multi_reduction <add>, %21, %cst_7 [2] : vector<4x8x256xf32> to vector<4x8xf32>
    %23 = vector.shape_cast %22 : vector<4x8xf32> to vector<4x8x1xf32>
    %cst_8 = arith.constant 2.560000e+02 : f32
    %24 = vector.broadcast %cst_8 : f32 to vector<4x8x1xf32>
    %25 = arith.divf %23, %24 : vector<4x8x1xf32>
    %cst_9 = arith.constant dense<0.000000e+00> : vector<4x8xf32>
    %26 = vector.multi_reduction <add>, %25, %cst_9 [2] : vector<4x8x1xf32> to vector<4x8xf32>
    %c0_10 = arith.constant 0 : index
    %c0_11 = arith.constant 0 : index
    %27 = vector.load %arg5[%c0_10, %c0_11] : memref<4x8xf32, #tpu.memory_space<vmem>>, vector<4x8xf32>
    tpu.vector_store %arg5[%c0_10, %c0_11], %26 {strides = array<i32>} : memref<4x8xf32, #tpu.memory_space<vmem>>, vector<4x8xf32>,
    %c0_12 = arith.constant 0 : index
    %c0_13 = arith.constant 0 : index
    %c0_14 = arith.constant 0 : index
    %28 = vector.load %arg3[%c0_12, %c0_13, %c0_14] : memref<4x8x16xf32, #tpu.memory_space<vmem>>, vector<4x8x16xf32>
    %29 = vector.broadcast %25 : vector<4x8x1xf32> to vector<4x8x16xf32>
    %30 = arith.mulf %29, %28 : vector<4x8x16xf32>
    %cst_15 = arith.constant dense<0.000000e+00> : vector<16xf32>
    %31 = vector.multi_reduction <add>, %30, %cst_15 [0, 1] : vector<4x8x16xf32> to vector<16xf32>
    %32 = vector.shape_cast %31 : vector<16xf32> to vector<1x1x16xf32>
    %33 = vector.shape_cast %32 : vector<1x1x16xf32> to vector<1x16xf32>
    %c0_16 = arith.constant 0 : index
    %c0_17 = arith.constant 0 : index
    %34 = vector.load %arg4[%c0_16, %c0_17] : memref<1x16xf32, #tpu.memory_space<vmem>>, vector<1x16xf32>
    %35 = arith.addf %33, %34 : vector<1x16xf32>
    %c0_18 = arith.constant 0 : index
    %c0_19 = arith.constant 0 : index
    %36 = vector.load %arg6[%c0_18, %c0_19] : memref<1x16xf32, #tpu.memory_space<vmem>>, vector<1x16xf32>
    tpu.vector_store %arg6[%c0_18, %c0_19], %35 {strides = array<i32>} : memref<1x16xf32, #tpu.memory_space<vmem>>, vector<1x16xf32>,
    return
  }
}

</mosaic_0001>

<llo_original>
// kernel: histogram_network_fwd.1
$region0: #{histogram_network_fwd.1}
  #allocation0 [shape = 'u32[]', space=smem, size = 0x4, offset = 0x4, fixed_abs, tag = 'smem constant byte address 0x4 - core index']
  #allocation1 [shape = 'u32[144,128]{1,0:T(1,128)}', space=vmem, size = 0x12000, scoped, tag = 'internal scratch']
  %s0 = inlined_call_operand.vmem [shape: f32[8,256], index: 0, kind: input, shape index: {}]
  %s1 = inlined_call_operand.vmem [shape: f32[4,8], index: 1, kind: input, shape index: {}]
  %s2 = inlined_call_operand.vmem [shape: f32[4,8], index: 2, kind: input, shape index: {}]
  %s3 = inlined_call_operand.vmem [shape: f32[4,8,16], index: 3, kind: input, shape index: {}]
  %s4 = inlined_call_operand.vmem [shape: f32[1,16], index: 4, kind: input, shape index: {}]
  %s5 = inlined_call_operand.vmem [shape: f32[4,8], index: 5, kind: output, shape index: {0}]
  %s6 = inlined_call_operand.vmem [shape: f32[1,16], index: 6, kind: output, shape index: {1}]
  %7 = xla_tuple %s5, %s6
  %s8 = sld [smem:[#allocation0]]
  $region38: #{histogram_network_fwd.1} parent=0
    _
  %s10 = ssub.s32 1, %s8
  %s11 = scalar_select 0, %s10, %s8
  // Predicated region
  $region2: #{histogram_network_fwd.1} parent=0 // pred_check
    _
  $region3: #{histogram_network_fwd.1} parent=0 // pred_check_branch
    %13 = sbr.rel (0) target = $region5
  $region4: #{histogram_network_fwd.1} parent=0 // pred_region
    _
  $region5: #{histogram_network_fwd.1} parent=0 // pred_fallthru
    _
  // Predicated region
  $region6: #{histogram_network_fwd.1} parent=0 // pred_check
    _
  $region7: #{histogram_network_fwd.1} parent=0 // pred_check_branch
    %15 = sbr.rel (0) target = $region9
  $region8: #{histogram_network_fwd.1} parent=0 // pred_region
    _
  $region9: #{histogram_network_fwd.1} parent=0 // pred_fallthru
    _
  // Predicated region
  $region10: #{histogram_network_fwd.1} parent=0 // pred_check
    _
  $region11: #{histogram_network_fwd.1} parent=0 // pred_check_branch
    %17 = sbr.rel (0) target = $region13
  $region12: #{histogram_network_fwd.1} parent=0 // pred_region
    _
  $region13: #{histogram_network_fwd.1} parent=0 // pred_fallthru
    _
  // Predicated region
  $region14: #{histogram_network_fwd.1} parent=0 // pred_check
    _
  $region15: #{histogram_network_fwd.1} parent=0 // pred_check_branch
    %19 = sbr.rel (0) target = $region17
  $region16: #{histogram_network_fwd.1} parent=0 // pred_region
    _
  $region17: #{histogram_network_fwd.1} parent=0 // pred_fallthru
    _
  // Predicated region
  $region18: #{histogram_network_fwd.1} parent=0 // pred_check
    _
  $region19: #{histogram_network_fwd.1} parent=0 // pred_check_branch
    %21 = sbr.rel (0) target = $region21
  $region20: #{histogram_network_fwd.1} parent=0 // pred_region
    _
  $region21: #{histogram_network_fwd.1} parent=0 // pred_fallthru
    _
  %v22 = vld [vmem:[%s0] sm:$0xff]
  %v23 = vld [vmem:[%s0 + $0x8] sm:$0xff]
  %v24 = vld [vmem:[%s1] sm:$0xf]
  %v25 = vlaneseq
  %v26 = vshrl.u32 %v25, 7
  %v27 = vsub.s32 0, %v26
  %v28 = vrot.slane %v24, %v27
  %30 = vbcast.lane.b32.xlu0 %v28, 256
  %v31 = vpop.permute.xlu0 %30
  %v32 = vlaneseq
  %v33 = vshrl.u32 %v32, 7
  %v34 = vsub.s32 1, %v33
  %v35 = vrot.slane %v24, %v34
  %37 = vbcast.lane.b32.xlu0 %v35, 256
  %v38 = vpop.permute.xlu0 %37
  %v39 = vlaneseq
  %v40 = vshrl.u32 %v39, 7
  %v41 = vsub.s32 2, %v40
  %v42 = vrot.slane %v24, %v41
  %44 = vbcast.lane.b32.xlu0 %v42, 256
  %v45 = vpop.permute.xlu0 %44
  %v46 = vlaneseq
  %v47 = vshrl.u32 %v46, 7
  %v48 = vsub.s32 3, %v47
  %v49 = vrot.slane %v24, %v48
  %51 = vbcast.lane.b32.xlu0 %v49, 256
  %v52 = vpop.permute.xlu0 %51
  %v53 = vld [vmem:[%s2] sm:$0xf]
  %v54 = vlaneseq
  %v55 = vshrl.u32 %v54, 7
  %v56 = vsub.s32 0, %v55
  %v57 = vrot.slane %v53, %v56
  %59 = vbcast.lane.b32.xlu0 %v57, 256
  %v60 = vpop.permute.xlu0 %59
  %v61 = vlaneseq
  %v62 = vshrl.u32 %v61, 7
  %v63 = vsub.s32 1, %v62
  %v64 = vrot.slane %v53, %v63
  %66 = vbcast.lane.b32.xlu0 %v64, 256
  %v67 = vpop.permute.xlu0 %66
  %v68 = vlaneseq
  %v69 = vshrl.u32 %v68, 7
  %v70 = vsub.s32 2, %v69
  %v71 = vrot.slane %v53, %v70
  %73 = vbcast.lane.b32.xlu0 %v71, 256
  %v74 = vpop.permute.xlu0 %73
  %v75 = vlaneseq
  %v76 = vshrl.u32 %v75, 7
  %v77 = vsub.s32 3, %v76
  %v78 = vrot.slane %v53, %v77
  %80 = vbcast.lane.b32.xlu0 %v78, 256
  %v81 = vpop.permute.xlu0 %80
  %v82 = vadd.f32 %v22, %v31
  %v83 = vadd.f32 %v23, %v31
  %v84 = vadd.f32 %v22, %v38
  %v85 = vadd.f32 %v23, %v38
  %v86 = vadd.f32 %v22, %v45
  %v87 = vadd.f32 %v23, %v45
  %v88 = vadd.f32 %v22, %v52
  %v89 = vadd.f32 %v23, %v52
  %v90 = vmul.f32 %v60, %v82
  %v91 = vmul.f32 %v60, %v83
  %v92 = vmul.f32 %v67, %v84
  %v93 = vmul.f32 %v67, %v85
  %v94 = vmul.f32 %v74, %v86
  %v95 = vmul.f32 %v74, %v87
  %v96 = vmul.f32 %v81, %v88
  %v97 = vmul.f32 %v81, %v89
  %v98 = vmul.f32 %v90, %v90
  %v99 = vmul.f32 %v91, %v91
  %v100 = vmul.f32 %v92, %v92
  %v101 = vmul.f32 %v93, %v93
  %v102 = vmul.f32 %v94, %v94
  %v103 = vmul.f32 %v95, %v95
  %v104 = vmul.f32 %v96, %v96
  %v105 = vmul.f32 %v97, %v97
  %v106 = vsub.f32 0.0, %v98
  %v107 = vsub.f32 0.0, %v99
  %v108 = vsub.f32 0.0, %v100
  %v109 = vsub.f32 0.0, %v101
  %v110 = vsub.f32 0.0, %v102
  %v111 = vsub.f32 0.0, %v103
  %v112 = vsub.f32 0.0, %v104
  %v113 = vsub.f32 0.0, %v105
  %v114 = vmul.f32 %v106, 1.442695
  %v115 = vpow.pop %v114
  %v116 = vmul.f32 %v107, 1.442695
  %v117 = vpow.pop %v116
  %v118 = vmul.f32 %v108, 1.442695
  %v119 = vpow.pop %v118
  %v120 = vmul.f32 %v109, 1.442695
  %v121 = vpow.pop %v120
  %v122 = vmul.f32 %v110, 1.442695
  %v123 = vpow.pop %v122
  %v124 = vmul.f32 %v111, 1.442695
  %v125 = vpow.pop %v124
  %v126 = vmul.f32 %v112, 1.442695
  %v127 = vpow.pop %v126
  %v128 = vmul.f32 %v113, 1.442695
  %v129 = vpow.pop %v128
  %v130 = vadd.f32 %v115, %v119
  %v131 = vadd.f32 %v130, %v123
  %v132 = vadd.f32 %v131, %v127
  %v133 = vadd.f32 %v117, %v121
  %v134 = vadd.f32 %v133, %v125
  %v135 = vadd.f32 %v134, %v129
  %v136 = vadd.f32 %v132, 1e-05
  %v137 = vadd.f32 %v135, 1e-05
  %v138 = vrcp.pop %v136
  %v139 = vrcp.pop %v137
  %v140 = vmul.f32 %v115, %v138
  %v141 = vmul.f32 %v117, %v139
  %v142 = vmul.f32 %v119, %v138
  %v143 = vmul.f32 %v121, %v139
  %v144 = vmul.f32 %v123, %v138
  %v145 = vmul.f32 %v125, %v139
  %v146 = vmul.f32 %v127, %v138
  %v147 = vmul.f32 %v129, %v139
  %v148 = vadd.f32 %v140, %v141
  %149 = vadd.xlane.f32.xlu0 %v148
  %v150 = vpop.xlane.xlu0 %149
  %v151 = vadd.f32 %v142, %v143
  %152 = vadd.xlane.f32.xlu0 %v151
  %v153 = vpop.xlane.xlu0 %152
  %v154 = vadd.f32 %v144, %v145
  %155 = vadd.xlane.f32.xlu0 %v154
  %v156 = vpop.xlane.xlu0 %155
  %v157 = vadd.f32 %v146, %v147
  %158 = vadd.xlane.f32.xlu0 %v157
  %v159 = vpop.xlane.xlu0 %158
  %v160 = vrcp.pop 256.0
  %v161 = vmul.f32 %v150, %v160
  %v162 = vmul.f32 %v153, %v160
  %v163 = vmul.f32 %v156, %v160
  %v164 = vmul.f32 %v159, %v160
  %v165 = vadd.f32 %v161, 0.0
  %v166 = vadd.f32 %v162, 0.0
  %v167 = vadd.f32 %v163, 0.0
  %v168 = vadd.f32 %v164, 0.0
  %v173 = vlaneseq
  %v174 = vand.u32 %v173, 127
  %v175 = vlaneseq
  %v176 = vshrl.u32 %v175, 7
  %v177 = vsub.s32 %v174, %v176
  %v178 = vrot.slane %v165, %v177
  %v179 = vlaneseq
  %v180 = vshrl.u32 %v179, 7
  %v181 = vsub.s32 %v174, %v180
  %v182 = vrot.slane %v166, %v181
  %v183 = vlaneseq
  %v184 = vshrl.u32 %v183, 7
  %v185 = vsub.s32 %v174, %v184
  %v186 = vrot.slane %v167, %v185
  %v187 = vlaneseq
  %v188 = vshrl.u32 %v187, 7
  %v189 = vsub.s32 %v174, %v188
  %v190 = vrot.slane %v168, %v189
  %vm191 = vcmask 1041409
  %v192 = vsel %vm191, %v182, %v178
  %vm193 = vcmask 1042434
  %v194 = vsel %vm193, %v186, %v192
  %vm195 = vcmask 1043459
  %v196 = vsel %vm195, %v190, %v194
  %vm198 = vcmask 60416
  %199 = vst.msk [vmem:[%s5] sm:$0xf] %vm198, %v196
  %v200 = vld [vmem:[%s3] sm:$0xff]
  %v201 = vld [vmem:[%s3 + $0x8] sm:$0xff]
  %v202 = vld [vmem:[%s3 + $0x10] sm:$0xff]
  %v203 = vld [vmem:[%s3 + $0x18] sm:$0xff]
  %v204 = vmul.f32 %v161, %v200
  %v205 = vmul.f32 %v162, %v201
  %v206 = vmul.f32 %v163, %v202
  %v207 = vmul.f32 %v164, %v203
  %vm208 = vcmask 130048
  %v209 = vsel %vm208, %v204, 0.0
  %v210 = vsel %vm208, %v205, 0.0
  %v211 = vadd.f32 %v209, %v210
  %v212 = vsel %vm208, %v206, 0.0
  %v213 = vadd.f32 %v211, %v212
  %v214 = vsel %vm208, %v207, 0.0
  %v215 = vadd.f32 %v213, %v214
  %v216 = vrot.slane %v215, 4
  %v217 = vadd.f32 %v215, %v216
  %v218 = vrot.slane %v217, 2
  %v219 = vadd.f32 %v217, %v218
  %v220 = vrot.slane %v219, 1
  %v221 = vadd.f32 %v219, %v220
  %v222 = vld [vmem:[%s4] sm:$0x1]
  %v223 = vadd.f32 %v221, %v222
  %vm224 = vcmask 122880
  %225 = vst.msk [vmem:[%s6] sm:$0x1] %vm224, %v223
  // Predicated region
  $region22: #{histogram_network_fwd.1} parent=0 // pred_check
    _
  $region23: #{histogram_network_fwd.1} parent=0 // pred_check_branch
    %227 = sbr.rel (0) target = $region25
  $region24: #{histogram_network_fwd.1} parent=0 // pred_region
    _
  $region25: #{histogram_network_fwd.1} parent=0 // pred_fallthru
    _
  // Predicated region
  $region26: #{histogram_network_fwd.1} parent=0 // pred_check
    _
  $region27: #{histogram_network_fwd.1} parent=0 // pred_check_branch
    %229 = sbr.rel (0) target = $region29
  $region28: #{histogram_network_fwd.1} parent=0 // pred_region
    _
  $region29: #{histogram_network_fwd.1} parent=0 // pred_fallthru
    _
  // Predicated region
  $region30: #{histogram_network_fwd.1} parent=0 // pred_check
    _
  $region31: #{histogram_network_fwd.1} parent=0 // pred_check_branch
    %231 = sbr.rel (0) target = $region33
  $region32: #{histogram_network_fwd.1} parent=0 // pred_region
    _
  $region33: #{histogram_network_fwd.1} parent=0 // pred_fallthru
    _
  // Predicated region
  $region34: #{histogram_network_fwd.1} parent=0 // pred_check
    _
  $region35: #{histogram_network_fwd.1} parent=0 // pred_check_branch
    %233 = sbr.rel (0) target = $region37
  $region36: #{histogram_network_fwd.1} parent=0 // pred_region
    _
  $region37: #{histogram_network_fwd.1} parent=0 // pred_fallthru
    _

</llo_original>
